<compile_context>
chip_gen: v7x
topology: tpu7x:2x2x1
jax: 0.10.0
libtpu: 0.0.40
codegen_flags: <defaults>
</compile_context>

<pallas_src>
import functools

import jax
import jax.numpy as jnp
from jax.experimental import pallas as pl
from jax.experimental.pallas import tpu as pltpu

# ---------------- static configuration (config.*) ----------------
BATCH = 2            # batch size
NUM_VARS = 16        # config.num_predicates
HIDDEN = 32          # config.hidden_size
NUM_CLAUSES = 8      # clauses per problem
CLAUSE_SIZE = 4      # literals per clause
SAT_ITERS = 2        # config.sat_iterations


# ---------------------------- Pallas kernel ----------------------------
def _sat_kernel(l_ref, bias_ref, vs0_ref, mats_ref, rows_ref, b2_ref, out_ref,
                *, batch, num_vars, hidden, iters):
    # vs carried as a value across the unrolled loop; refs are read at point of use.
    vs = vs0_ref[...]                                                   # (B, V, H)

    # Unrolled message-passing iterations (iters is a small static count).
    for _ in range(iters):
        vs_flat = vs.reshape(batch * num_vars, hidden)                  # (B*V, H)
        # Folded chain: only 2 serially-dependent matmuls per iteration.
        sel = jnp.dot(l_ref[...], vs_flat,
                      preferred_element_type=jnp.float32)               # (V, H)
        msg = jnp.dot(sel, mats_ref[0],
                      preferred_element_type=jnp.float32) + bias_ref[...]  # (V, H)
        # Same message is added to every batch element (reference semantics);
        # broadcast add instead of concatenate -> no extra (B*V, H) temporary / stores.
        vs = vs + msg[None]                                             # (B, V, H)

    # Solution head: sigmoid(Linear_1(relu(Linear_H(vs)))).
    vs_flat = vs.reshape(batch * num_vars, hidden)
    h1 = jnp.dot(vs_flat, mats_ref[1],
                 preferred_element_type=jnp.float32) + rows_ref[0:1, :] # (B*V, H)
    h1 = jnp.maximum(h1, 0.0)
    prod = h1 * rows_ref[1:2, :]                                        # (B*V, H)
    logits = jnp.sum(prod.reshape(batch, num_vars, hidden), axis=-1) + b2_ref[0]  # (B, V)
    out_ref[...] = jax.nn.sigmoid(logits)                               # lane-dense (B, V)


# ---------------------------- wrapper (glue) ----------------------------
def neural_sat_solver(clause_indices, variable_states, params, *, sat_iterations=SAT_ITERS):
    """clause_indices: (B, C, S) int32; variable_states: (B, V, H) float32."""
    (wv2c, bv2c, wce, bce, wc2v, bc2v, w1, b1, w2, b2) = params
    B, C, S = clause_indices.shape
    V, H = variable_states.shape[1], variable_states.shape[2]
    hi = jax.lax.Precision.HIGHEST   # host-side folding is one-time; do it exactly

    onehot = jax.nn.one_hot(clause_indices, V, dtype=jnp.float32)        # (B, C, S, V)
    a_op = onehot.mean(axis=2)                                           # (B, C, V) gather+mean
    mask = (onehot.sum(axis=2) > 0).astype(jnp.float32)                  # (B, C, V) clause contains var
    cnt = mask.sum(axis=(0, 1))                                          # (V,) relevant (b, c) pairs per var
    inv_cnt = jnp.where(cnt > 0, 1.0 / jnp.maximum(cnt, 1.0), 0.0)       # safe reciprocal (no 1/0)
    gate = (cnt > 0).astype(jnp.float32)[:, None]                        # (V, 1) vars with >=1 clause

    # L[v, b*V + w] = sum_c mask[b,c,v]/cnt[v] * a_op[b,c,w]   (clause-mean then var-mean)
    mt3 = jnp.transpose(mask, (2, 0, 1)) * inv_cnt[:, None, None]        # (V, B, C)
    L = jnp.einsum('vbc,bcw->vbw', mt3, a_op, precision=hi).reshape(V, B * V)

    # Folded per-iteration linear operator and bias (cuts 5 matmuls/iter -> 2).
    R = jnp.dot(jnp.dot(wv2c, wce, precision=hi), wc2v, precision=hi)                   # (H, H)
    bias_chain = jnp.dot(jnp.dot(bv2c, wce, precision=hi) + bce, wc2v, precision=hi)    # (1, H)
    bias_total = gate * (bias_chain + bc2v)                              # (V, H); zero rows => no message

    mats = jnp.stack([R, w1], axis=0)                                    # (2, H, H) weight slab
    rows = jnp.concatenate([b1, w2], axis=0)                             # (2, H)   b1 / w2 row slab
    b2v = b2.reshape(1)                                                  # (1,) scalar -> SMEM

    kern = functools.partial(_sat_kernel, batch=B, num_vars=V, hidden=H,
                             iters=sat_iterations)

    flops = sat_iterations * (2 * V * (B * V) * H + 2 * V * H * H) + 2 * (B * V) * H * H
    bytes_accessed = 4 * (V * B * V + V * H + B * V * H + 2 * H * H + 2 * H + 1 + B * V)

    probs = pl.pallas_call(
        kern,
        out_shape=jax.ShapeDtypeStruct((B, V), jnp.float32),
        in_specs=[pl.BlockSpec(memory_space=pltpu.MemorySpace.VMEM)] * 5
                 + [pl.BlockSpec(memory_space=pltpu.MemorySpace.SMEM)],
        out_specs=pl.BlockSpec(memory_space=pltpu.MemorySpace.VMEM),
        cost_estimate=pl.CostEstimate(flops=flops, transcendentals=B * V,
                                      bytes_accessed=bytes_accessed),
    )(L, bias_total, variable_states, mats, rows, b2v)
    return probs                                                          # (B, V)


# ---------------------------- pure-JAX reference ----------------------------
def reference_forward(clause_indices, variable_states, params, sat_iterations):
    (wv2c, bv2c, wce, bce, wc2v, bc2v, w1, b1, w2, b2) = params
    B, C, S = clause_indices.shape
    V = variable_states.shape[1]
    vs = variable_states
    for _ in range(sat_iterations):
        cs_list = []
        for i in range(C):
            cv = clause_indices[:, i]                                   # (B, S)
            g = vs[jnp.arange(B)[:, None], cv]                          # (B, S, H)
            cvs = g @ wv2c + bv2c                                       # (B, S, H)
            cs_list.append(cvs.mean(axis=1) @ wce + bce)                # (B, H)
        cs = jnp.stack(cs_list, axis=1)                                 # (B, C, H)
        for v in range(V):
            rel = (clause_indices == v).any(-1)                         # (B, C)
            if bool(rel.any()):
                messages = (cs[rel] @ wc2v + bc2v).mean(axis=0)         # (H,)
                vs = vs.at[:, v].add(messages)
    h1 = jnp.maximum(vs @ w1 + b1, 0.0)
    logits = jnp.sum(h1 * w2, axis=-1) + b2[0, 0]
    return jax.nn.sigmoid(logits)


# ---------------------------- main ----------------------------
if __name__ == "__main__":
    key = jax.random.PRNGKey(0)
    keys = jax.random.split(key, 16)

    def linear_init(kw, kb, fan_in, fan_out):
        bound = 1.0 / (fan_in ** 0.5)
        w = jax.random.uniform(kw, (fan_in, fan_out), jnp.float32, -bound, bound)
        b = jax.random.uniform(kb, (1, fan_out), jnp.float32, -bound, bound)
        return w, b

    # nn.Embedding(num_predicates, hidden)
    emb = jax.random.normal(keys[0], (NUM_VARS, HIDDEN), jnp.float32)
    wce, bce = linear_init(keys[1], keys[2], HIDDEN, HIDDEN)     # clause_embedding
    wv2c, bv2c = linear_init(keys[3], keys[4], HIDDEN, HIDDEN)   # var_to_clause
    wc2v, bc2v = linear_init(keys[5], keys[6], HIDDEN, HIDDEN)   # clause_to_var
    w1, b1 = linear_init(keys[7], keys[8], HIDDEN, HIDDEN)       # solution_head[0]
    # solution_head[2]: Linear(H, 1); weight stored as (1, H) (PyTorch layout), bias (1, 1)
    bound2 = 1.0 / (HIDDEN ** 0.5)
    w2 = jax.random.uniform(keys[9], (1, HIDDEN), jnp.float32, -bound2, bound2)
    b2 = jax.random.uniform(keys[10], (1, 1), jnp.float32, -bound2, bound2)
    params = (wv2c, bv2c, wce, bce, wc2v, bc2v, w1, b1, w2, b2)

    clause_indices = jax.random.randint(
        keys[11], (BATCH, NUM_CLAUSES, CLAUSE_SIZE), 0, NUM_VARS, dtype=jnp.int32)

    # variable_states=None case: expand embedding table over the batch.
    # TODO(synk): PyTorch's in-place update of an expand()ed embedding view is ill-defined
    # (overlapping memory); we treat it as a materialized per-batch copy.
    variable_states = jnp.broadcast_to(emb[None], (BATCH, NUM_VARS, HIDDEN)).astype(jnp.float32)
    variable_states = jnp.array(variable_states)

    out = neural_sat_solver(clause_indices, variable_states, params,
                            sat_iterations=SAT_ITERS)
    out = jax.block_until_ready(out)

    # Reference in full f32 matmul precision (closest to PyTorch fp32 semantics).
    with jax.default_matmul_precision("float32"):
        ref = reference_forward(clause_indices, variable_states, params, SAT_ITERS)
    assert out.shape == (BATCH, NUM_VARS), out.shape
    # Tolerance accounts for default (single-pass bf16-input) MXU precision in the kernel
    # plus the host-side algebraic folding changing the rounding order.
    max_err = float(jnp.max(jnp.abs(out - ref)))
    assert max_err < 1e-2, f"mismatch vs reference: {max_err}"

    print("KERNEL_OK")
</pallas_src>

<mosaic_0001>
module attributes {stable_mosaic.version = 11 : i64} {
  func.func @_sat_kernel(%arg0: memref<16x32xf32, #tpu.memory_space<vmem>>, %arg1: memref<16x32xf32, #tpu.memory_space<vmem>>, %arg2: memref<2x16x32xf32, #tpu.memory_space<vmem>>, %arg3: memref<2x32x32xf32, #tpu.memory_space<vmem>>, %arg4: memref<2x32xf32, #tpu.memory_space<vmem>>, %arg5: memref<1xf32, #tpu.memory_space<smem>>, %arg6: memref<2x16xf32, #tpu.memory_space<vmem>>) attributes {dimension_semantics = [], scalar_prefetch = 0 : i64, scratch_operands = 0 : i64, tpu.core_type = #tpu.core_type<tc>} {
    %c0 = arith.constant 0 : index
    %c0_0 = arith.constant 0 : index
    %c0_1 = arith.constant 0 : index
    %0 = vector.load %arg2[%c0, %c0_0, %c0_1] : memref<2x16x32xf32, #tpu.memory_space<vmem>>, vector<2x16x32xf32>
    %1 = vector.shape_cast %0 : vector<2x16x32xf32> to vector<32x32xf32>
    %c0_2 = arith.constant 0 : index
    %c0_3 = arith.constant 0 : index
    %2 = vector.load %arg0[%c0_2, %c0_3] : memref<16x32xf32, #tpu.memory_space<vmem>>, vector<16x32xf32>
    %cst = arith.constant dense<0.000000e+00> : vector<16x32xf32>
    %3 = tpu.matmul %2, %1, %cst {dimension_numbers = #tpu.dot_dimension_numbers<[1], [0], [0], [1], [0, 0, 1, 1], [], []>} : vector<16x32xf32>, vector<32x32xf32>, vector<16x32xf32> -> vector<16x32xf32>
    %c0_4 = arith.constant 0 : index
    %c0_5 = arith.constant 0 : index
    %c0_6 = arith.constant 0 : index
    %4 = vector.load %arg3[%c0_4, %c0_5, %c0_6] : memref<2x32x32xf32, #tpu.memory_space<vmem>>, vector<1x32x32xf32>
    %5 = vector.shape_cast %4 : vector<1x32x32xf32> to vector<32x32xf32>
    %cst_7 = arith.constant dense<0.000000e+00> : vector<16x32xf32>
    %6 = tpu.matmul %3, %5, %cst_7 {dimension_numbers = #tpu.dot_dimension_numbers<[1], [0], [0], [1], [0, 0, 1, 1], [], []>} : vector<16x32xf32>, vector<32x32xf32>, vector<16x32xf32> -> vector<16x32xf32>
    %c0_8 = arith.constant 0 : index
    %c0_9 = arith.constant 0 : index
    %7 = vector.load %arg1[%c0_8, %c0_9] : memref<16x32xf32, #tpu.memory_space<vmem>>, vector<16x32xf32>
    %8 = arith.addf %6, %7 : vector<16x32xf32>
    %9 = vector.shape_cast %8 : vector<16x32xf32> to vector<1x16x32xf32>
    %10 = vector.broadcast %9 : vector<1x16x32xf32> to vector<2x16x32xf32>
    %11 = arith.addf %0, %10 : vector<2x16x32xf32>
    %12 = vector.shape_cast %11 : vector<2x16x32xf32> to vector<32x32xf32>
    %c0_10 = arith.constant 0 : index
    %c0_11 = arith.constant 0 : index
    %13 = vector.load %arg0[%c0_10, %c0_11] : memref<16x32xf32, #tpu.memory_space<vmem>>, vector<16x32xf32>
    %cst_12 = arith.constant dense<0.000000e+00> : vector<16x32xf32>
    %14 = tpu.matmul %13, %12, %cst_12 {dimension_numbers = #tpu.dot_dimension_numbers<[1], [0], [0], [1], [0, 0, 1, 1], [], []>} : vector<16x32xf32>, vector<32x32xf32>, vector<16x32xf32> -> vector<16x32xf32>
    %c0_13 = arith.constant 0 : index
    %c0_14 = arith.constant 0 : index
    %c0_15 = arith.constant 0 : index
    %15 = vector.load %arg3[%c0_13, %c0_14, %c0_15] : memref<2x32x32xf32, #tpu.memory_space<vmem>>, vector<1x32x32xf32>
    %16 = vector.shape_cast %15 : vector<1x32x32xf32> to vector<32x32xf32>
    %cst_16 = arith.constant dense<0.000000e+00> : vector<16x32xf32>
    %17 = tpu.matmul %14, %16, %cst_16 {dimension_numbers = #tpu.dot_dimension_numbers<[1], [0], [0], [1], [0, 0, 1, 1], [], []>} : vector<16x32xf32>, vector<32x32xf32>, vector<16x32xf32> -> vector<16x32xf32>
    %c0_17 = arith.constant 0 : index
    %c0_18 = arith.constant 0 : index
    %18 = vector.load %arg1[%c0_17, %c0_18] : memref<16x32xf32, #tpu.memory_space<vmem>>, vector<16x32xf32>
    %19 = arith.addf %17, %18 : vector<16x32xf32>
    %20 = vector.shape_cast %19 : vector<16x32xf32> to vector<1x16x32xf32>
    %21 = vector.broadcast %20 : vector<1x16x32xf32> to vector<2x16x32xf32>
    %22 = arith.addf %11, %21 : vector<2x16x32xf32>
    %23 = vector.shape_cast %22 : vector<2x16x32xf32> to vector<32x32xf32>
    %c1 = arith.constant 1 : index
    %c0_19 = arith.constant 0 : index
    %c0_20 = arith.constant 0 : index
    %24 = vector.load %arg3[%c1, %c0_19, %c0_20] : memref<2x32x32xf32, #tpu.memory_space<vmem>>, vector<1x32x32xf32>
    %25 = vector.shape_cast %24 : vector<1x32x32xf32> to vector<32x32xf32>
    %cst_21 = arith.constant dense<0.000000e+00> : vector<32x32xf32>
    %26 = tpu.matmul %23, %25, %cst_21 {dimension_numbers = #tpu.dot_dimension_numbers<[1], [0], [0], [1], [0, 0, 1, 1], [], []>} : vector<32x32xf32>, vector<32x32xf32>, vector<32x32xf32> -> vector<32x32xf32>
    %c0_22 = arith.constant 0 : index
    %c0_23 = arith.constant 0 : index
    %27 = vector.load %arg4[%c0_22, %c0_23] : memref<2x32xf32, #tpu.memory_space<vmem>>, vector<1x32xf32>
    %28 = vector.broadcast %27 : vector<1x32xf32> to vector<32x32xf32>
    %29 = arith.addf %26, %28 : vector<32x32xf32>
    %cst_24 = arith.constant 0.000000e+00 : f32
    %30 = vector.broadcast %cst_24 : f32 to vector<32x32xf32>
    %31 = arith.maximumf %29, %30 : vector<32x32xf32>
    %c1_25 = arith.constant 1 : index
    %c0_26 = arith.constant 0 : index
    %32 = vector.load %arg4[%c1_25, %c0_26] : memref<2x32xf32, #tpu.memory_space<vmem>>, vector<1x32xf32>
    %33 = vector.broadcast %32 : vector<1x32xf32> to vector<32x32xf32>
    %34 = arith.mulf %31, %33 : vector<32x32xf32>
    %35 = vector.shape_cast %34 : vector<32x32xf32> to vector<2x16x32xf32>
    %cst_27 = arith.constant dense<0.000000e+00> : vector<2x16xf32>
    %36 = vector.multi_reduction <add>, %35, %cst_27 [2] : vector<2x16x32xf32> to vector<2x16xf32>
    %c0_28 = arith.constant 0 : index
    %37 = memref.load %arg5[%c0_28] : memref<1xf32, #tpu.memory_space<smem>>
    %38 = vector.broadcast %37 : f32 to vector<2x16xf32>
    %39 = arith.addf %36, %38 : vector<2x16xf32>
    %40 = arith.negf %39 : vector<2x16xf32>
    %41 = math.exp %40 : vector<2x16xf32>
    %cst_29 = arith.constant 1.000000e+00 : f32
    %42 = vector.broadcast %cst_29 : f32 to vector<2x16xf32>
    %43 = arith.addf %42, %41 : vector<2x16xf32>
    %44 = arith.divf %42, %43 : vector<2x16xf32>
    %c0_30 = arith.constant 0 : index
    %c0_31 = arith.constant 0 : index
    %45 = vector.load %arg6[%c0_30, %c0_31] : memref<2x16xf32, #tpu.memory_space<vmem>>, vector<2x16xf32>
    tpu.vector_store %arg6[%c0_30, %c0_31], %44 {strides = array<i32>} : memref<2x16xf32, #tpu.memory_space<vmem>>, vector<2x16xf32>,
    return
  }
}

</mosaic_0001>

<llo_original>
// kernel: tpu_custom_call.1
$region0: #{tpu_custom_call.1}
  #allocation0 [shape = 'u32[]', space=smem, size = 0x4, offset = 0x4, fixed_abs, tag = 'smem constant byte address 0x4 - core index']
  #allocation1 [shape = 'u32[144,128]{1,0:T(1,128)}', space=vmem, size = 0x12000, scoped, tag = 'internal scratch']
  #allocation2 [shape = 'f32[1]{0:T(128)S(6)}', space=smem, size = 0x200, scoped, tag = 'scoped memory for tpu_custom_call.1']
  %s0 = inlined_call_operand.hbm [shape: f32[16,32], index: 0, kind: input, shape index: {}]
  %s1 = inlined_call_operand.hbm [shape: f32[16,32], index: 1, kind: input, shape index: {}]
  %s2 = inlined_call_operand.hbm [shape: f32[2,16,32], index: 2, kind: input, shape index: {}]
  %s3 = inlined_call_operand.hbm [shape: f32[2,32,32], index: 3, kind: input, shape index: {}]
  %s4 = inlined_call_operand.vmem [shape: f32[2,32], index: 4, kind: input, shape index: {}]
  %s5 = inlined_call_operand.<no memory space> [shape: f32[1], index: 5, kind: input, shape index: {}]
  %s6 = inlined_call_operand.hbm [shape: f32[2,16], index: 6, kind: output, shape index: {}]
  %s7 = sld [smem:[#allocation0]]
  $region50: #{tpu_custom_call.1} parent=0
    _
  %s9 = ssub.s32 1, %s7
  %s10 = scalar_select 0, %s9, %s7
  %11 = sst [smem:[#allocation2]] %s5
  $region1: #{tpu_custom_call.1} parent=0
    #allocation3 [shape = 'u8[8192]{0}', space=vmem, size = 0x2000, scoped, tag = 'input window, operand 0, single buffered']
    #allocation4 [shape = 's32[1]{0}', space=sflag, size = 0x4, scoped, tag = 'scoped memory for tpu_custom_call.1']
    #allocation5 [shape = 's32[1]{0}', space=sflag, size = 0x4, scoped, tag = 'scoped memory for tpu_custom_call.1']
    #allocation6 [shape = 'u8[8192]{0}', space=vmem, size = 0x2000, scoped, tag = 'input window, operand 1, single buffered']
    #allocation7 [shape = 's32[1]{0}', space=sflag, size = 0x4, scoped, tag = 'scoped memory for tpu_custom_call.1']
    #allocation8 [shape = 'u8[16384]{0}', space=vmem, size = 0x4000, scoped, tag = 'input window, operand 2, single buffered']
    #allocation9 [shape = 'u8[32768]{0}', space=vmem, size = 0x8000, scoped, tag = 'input window, operand 3, single buffered']
    #allocation10 [shape = 's32[1]{0}', space=sflag, size = 0x4, scoped, tag = 'scoped memory for tpu_custom_call.1']
    #allocation11 [shape = 'u8[1024]{0}', space=vmem, size = 0x400, scoped, tag = 'output window, operand 0, single buffered']
    %12 = vsyncpa [#allocation4], 0
    %13 = vsyncpa [#allocation7], 0
    %14 = vsyncpa [#allocation10], 0
    %15 = vsyncpa [#allocation5], 0
    // Predicated region
    $region2: #{tpu_custom_call.1} parent=1 // pred_check
      _
    $region3: #{tpu_custom_call.1} parent=1 // pred_check_branch
      %17 = sbr.rel (0) target = $region5
    $region4: #{tpu_custom_call.1} parent=1 // pred_region
      %s19 = ssub.s32 256, 256
      %20 = vsyncadd [#allocation4], %s19
      %s21 = sshll.u32 [#allocation3], 4
      %s22 = int_to_ptr.vmem [resolvable:$true] %s21
      %27 = dma.hbm_to_vmem [thread:$0]  %s0, 256, %s22, [#allocation4], 128, 128, 8
    $region5: #{tpu_custom_call.1} parent=1 // pred_fallthru
      _
    // Predicated region
    $region6: #{tpu_custom_call.1} parent=1 // pred_check
      _
    $region7: #{tpu_custom_call.1} parent=1 // pred_check_branch
      %29 = sbr.rel (0) target = $region9
    $region8: #{tpu_custom_call.1} parent=1 // pred_region
      %s31 = ssub.s32 256, 256
      %32 = vsyncadd [#allocation7], %s31
      %s33 = sshll.u32 [#allocation6], 4
      %s34 = int_to_ptr.vmem [resolvable:$true] %s33
      %39 = dma.hbm_to_vmem [thread:$0]  %s1, 256, %s34, [#allocation7], 128, 128, 8
    $region9: #{tpu_custom_call.1} parent=1 // pred_fallthru
      _
    // Predicated region
    $region10: #{tpu_custom_call.1} parent=1 // pred_check
      _
    $region11: #{tpu_custom_call.1} parent=1 // pred_check_branch
      %41 = sbr.rel (0) target = $region13
    $region12: #{tpu_custom_call.1} parent=1 // pred_region
      %s43 = ssub.s32 512, 512
      %44 = vsyncadd [#allocation7], %s43
      %s45 = sshll.u32 [#allocation8], 4
      %s46 = int_to_ptr.vmem [resolvable:$true] %s45
      %51 = dma.hbm_to_vmem [thread:$0]  %s2, 512, %s46, [#allocation7], 128, 128, 8
    $region13: #{tpu_custom_call.1} parent=1 // pred_fallthru
      _
    // Predicated region
    $region14: #{tpu_custom_call.1} parent=1 // pred_check
      _
    $region15: #{tpu_custom_call.1} parent=1 // pred_check_branch
      %53 = sbr.rel (0) target = $region17
    $region16: #{tpu_custom_call.1} parent=1 // pred_region
      %s55 = ssub.s32 1024, 1024
      %56 = vsyncadd [#allocation10], %s55
      %s57 = sshll.u32 [#allocation9], 4
      %s58 = int_to_ptr.vmem [resolvable:$true] %s57
      %63 = dma.hbm_to_vmem [thread:$0]  %s3, 1024, %s58, [#allocation10], 128, 128, 8
    $region17: #{tpu_custom_call.1} parent=1 // pred_fallthru
      _
    // Predicated region
    $region18: #{tpu_custom_call.1} parent=1 // pred_check
      _
    $region19: #{tpu_custom_call.1} parent=1 // pred_check_branch
      %65 = sbr.rel (0) target = $region21
    $region20: #{tpu_custom_call.1} parent=1 // pred_region
      _
    $region21: #{tpu_custom_call.1} parent=1 // pred_fallthru
      _
    // Predicated region
    $region22: #{tpu_custom_call.1} parent=1 // pred_check
      _
    $region23: #{tpu_custom_call.1} parent=1 // pred_check_branch
      %67 = sbr.rel (0) target = $region25
    $region24: #{tpu_custom_call.1} parent=1 // pred_region
      _
    $region25: #{tpu_custom_call.1} parent=1 // pred_fallthru
      _
    // Predicated region
    $region26: #{tpu_custom_call.1} parent=1 // pred_check
      _
    $region27: #{tpu_custom_call.1} parent=1 // pred_check_branch
      %69 = sbr.rel (0) target = $region29
    $region28: #{tpu_custom_call.1} parent=1 // pred_region
      %70 = dma.done [#allocation4], 256
    $region29: #{tpu_custom_call.1} parent=1 // pred_fallthru
      _
    // Predicated region
    $region30: #{tpu_custom_call.1} parent=1 // pred_check
      _
    $region31: #{tpu_custom_call.1} parent=1 // pred_check_branch
      %72 = sbr.rel (0) target = $region33
    $region32: #{tpu_custom_call.1} parent=1 // pred_region
      %73 = dma.done [#allocation7], 256
    $region33: #{tpu_custom_call.1} parent=1 // pred_fallthru
      _
    // Predicated region
    $region34: #{tpu_custom_call.1} parent=1 // pred_check
      _
    $region35: #{tpu_custom_call.1} parent=1 // pred_check_branch
      %75 = sbr.rel (0) target = $region37
    $region36: #{tpu_custom_call.1} parent=1 // pred_region
      %76 = dma.done [#allocation7], 512
    $region37: #{tpu_custom_call.1} parent=1 // pred_fallthru
      _
    // Predicated region
    $region38: #{tpu_custom_call.1} parent=1 // pred_check
      _
    $region39: #{tpu_custom_call.1} parent=1 // pred_check_branch
      %78 = sbr.rel (0) target = $region41
    $region40: #{tpu_custom_call.1} parent=1 // pred_region
      %79 = dma.done [#allocation10], 1024
    $region41: #{tpu_custom_call.1} parent=1 // pred_fallthru
      _
    %v80 = vld [vmem:[#allocation8] sm:$0xff]
    %v81 = vld [vmem:[#allocation8 + $0x8] sm:$0xff]
    %v82 = vld [vmem:[#allocation8 + $0x10] sm:$0xff]
    %v83 = vld [vmem:[#allocation8 + $0x18] sm:$0xff]
    %v84 = vld [vmem:[#allocation3] sm:$0xff]
    %v85 = vld [vmem:[#allocation3 + $0x8] sm:$0xff]
    %vm86 = vcmask 261120
    %v88 = vsel %vm86, %v84, 0
    %v91 = vsel %vm86, %v85, 0
    %93 = vmatprep.subr.mxu0 0.0
    %94 = vmatpush1.msra.mxu0 %v80
    %95 = vmatprep.subr.mxu0 0.0
    %96 = vmatpush1.msra.mxu0 %v81
    %97 = vmatprep.subr.mxu0 0.0
    %98 = vmatpush1.msra.mxu0 %v82
    %99 = vmatprep.subr.mxu0 0.0
    %100 = vmatpush1.msra.mxu0 %v83
    %101 = vmatprep.subr.mxu0 0.0
    %102 = vmatpush1.msra.mxu0 0.0
    %103 = vmatprep.subr.mxu0 0.0
    %104 = vmatpush1.msra.mxu0 0.0
    %105 = vmatprep.subr.mxu0 0.0
    %106 = vmatpush1.msra.mxu0 0.0
    %107 = vmatprep.subr.mxu0 0.0
    %108 = vmatpush1.msra.mxu0 0.0
    %109 = vmatprep.subr.mxu0 0.0
    %110 = vmatpush1.msra.mxu0 0.0
    %111 = vmatprep.subr.mxu0 0.0
    %112 = vmatpush1.msra.mxu0 0.0
    %113 = vmatprep.subr.mxu0 0.0
    %114 = vmatpush1.msra.mxu0 0.0
    %115 = vmatprep.subr.mxu0 0.0
    %116 = vmatpush1.msra.mxu0 0.0
    %117 = vmatprep.subr.mxu0 0.0
    %118 = vmatpush1.msra.mxu0 0.0
    %119 = vmatprep.subr.mxu0 0.0
    %120 = vmatpush1.msra.mxu0 0.0
    %121 = vmatprep.subr.mxu0 0.0
    %122 = vmatpush1.msra.mxu0 0.0
    %123 = vmatprep.subr.mxu0 0.0
    %124 = vmatpush1.msra.mxu0 0.0
    %125 = vmatprep.subr.mxu0 0.0
    %126 = vmatpush1.msra.mxu0 0.0
    %127 = vmatprep.subr.mxu0 0.0
    %128 = vmatpush1.msra.mxu0 0.0
    %129 = vmatprep.subr.mxu0 0.0
    %130 = vmatpush1.msra.mxu0 0.0
    %131 = vmatprep.subr.mxu0 0.0
    %132 = vmatpush1.msra.mxu0 0.0
    %133 = vmatprep.subr.mxu0 0.0
    %134 = vmatpush1.msra.mxu0 0.0
    %135 = vmatprep.subr.mxu0 0.0
    %136 = vmatpush1.msra.mxu0 0.0
    %137 = vmatprep.subr.mxu0 0.0
    %138 = vmatpush1.msra.mxu0 0.0
    %139 = vmatprep.subr.mxu0 0.0
    %140 = vmatpush1.msra.mxu0 0.0
    %141 = vmatprep.subr.mxu0 0.0
    %142 = vmatpush1.msra.mxu0 0.0
    %143 = vmatprep.subr.mxu0 0.0
    %144 = vmatpush1.msra.mxu0 0.0
    %145 = vmatprep.subr.mxu0 0.0
    %146 = vmatpush1.msra.mxu0 0.0
    %147 = vmatprep.subr.mxu0 0.0
    %148 = vmatpush1.msra.mxu0 0.0
    %149 = vmatprep.subr.mxu0 0.0
    %150 = vmatpush1.msra.mxu0 0.0
    %151 = vmatprep.subr.mxu0 0.0
    %152 = vmatpush1.msra.mxu0 0.0
    %153 = vmatprep.subr.mxu0 0.0
    %154 = vmatpush1.msra.mxu0 0.0
    %155 = vmatprep.subr.mxu0 0.0
    %156 = vmatpush1.msra.mxu0 0.0
    %157 = vmatprep.mubr.f32.mxu0 0.0
    %158 = vmatmul.mubr.f32.gmra.mrb[0].mxu0 %v88
    %v159 = vpop.f32.mrb[0].mxu0
    %v160 = vadd.f32 0.0, %v159
    %v161 = vpop.f32.mrb[0].mxu0
    %162 = vmatprep.mubr.f32.mxu0 0.0
    %163 = vmatmul.mubr.f32.gmra.mrb[0].mxu0 %v91
    %v164 = vpop.f32.mrb[0].mxu0
    %v165 = vadd.f32 0.0, %v164
    %v166 = vpop.f32.mrb[0].mxu0
    %167 = vdwg.mxu0
    %v168 = vld [vmem:[#allocation9] sm:$0xff]
    %v169 = vld [vmem:[#allocation9 + $0x8] sm:$0xff]
    %v170 = vld [vmem:[#allocation9 + $0x10] sm:$0xff]
    %v171 = vld [vmem:[#allocation9 + $0x18] sm:$0xff]
    %v172 = vld [vmem:[#allocation6] sm:$0xff]
    %v173 = vld [vmem:[#allocation6 + $0x8] sm:$0xff]
    %v175 = vsel %vm86, %v160, 0
    %v178 = vsel %vm86, %v165, 0
    %180 = vmatprep.subr.mxu0 0.0
    %181 = vmatpush1.msra.mxu0 %v168
    %182 = vmatprep.subr.mxu0 0.0
    %183 = vmatpush1.msra.mxu0 %v169
    %184 = vmatprep.subr.mxu0 0.0
    %185 = vmatpush1.msra.mxu0 %v170
    %186 = vmatprep.subr.mxu0 0.0
    %187 = vmatpush1.msra.mxu0 %v171
    %188 = vmatprep.subr.mxu0 0.0
    %189 = vmatpush1.msra.mxu0 0.0
    %190 = vmatprep.subr.mxu0 0.0
    %191 = vmatpush1.msra.mxu0 0.0
    %192 = vmatprep.subr.mxu0 0.0
    %193 = vmatpush1.msra.mxu0 0.0
    %194 = vmatprep.subr.mxu0 0.0
    %195 = vmatpush1.msra.mxu0 0.0
    %196 = vmatprep.subr.mxu0 0.0
    %197 = vmatpush1.msra.mxu0 0.0
    %198 = vmatprep.subr.mxu0 0.0
    %199 = vmatpush1.msra.mxu0 0.0
    %200 = vmatprep.subr.mxu0 0.0
    %201 = vmatpush1.msra.mxu0 0.0
    %202 = vmatprep.subr.mxu0 0.0
    %203 = vmatpush1.msra.mxu0 0.0
    %204 = vmatprep.subr.mxu0 0.0
    %205 = vmatpush1.msra.mxu0 0.0
    %206 = vmatprep.subr.mxu0 0.0
    %207 = vmatpush1.msra.mxu0 0.0
    %208 = vmatprep.subr.mxu0 0.0
    %209 = vmatpush1.msra.mxu0 0.0
    %210 = vmatprep.subr.mxu0 0.0
    %211 = vmatpush1.msra.mxu0 0.0
    %212 = vmatprep.subr.mxu0 0.0
    %213 = vmatpush1.msra.mxu0 0.0
    %214 = vmatprep.subr.mxu0 0.0
    %215 = vmatpush1.msra.mxu0 0.0
    %216 = vmatprep.subr.mxu0 0.0
    %217 = vmatpush1.msra.mxu0 0.0
    %218 = vmatprep.subr.mxu0 0.0
    %219 = vmatpush1.msra.mxu0 0.0
    %220 = vmatprep.subr.mxu0 0.0
    %221 = vmatpush1.msra.mxu0 0.0
    %222 = vmatprep.subr.mxu0 0.0
    %223 = vmatpush1.msra.mxu0 0.0
    %224 = vmatprep.subr.mxu0 0.0
    %225 = vmatpush1.msra.mxu0 0.0
    %226 = vmatprep.subr.mxu0 0.0
    %227 = vmatpush1.msra.mxu0 0.0
    %228 = vmatprep.subr.mxu0 0.0
    %229 = vmatpush1.msra.mxu0 0.0
    %230 = vmatprep.subr.mxu0 0.0
    %231 = vmatpush1.msra.mxu0 0.0
    %232 = vmatprep.subr.mxu0 0.0
    %233 = vmatpush1.msra.mxu0 0.0
    %234 = vmatprep.subr.mxu0 0.0
    %235 = vmatpush1.msra.mxu0 0.0
    %236 = vmatprep.subr.mxu0 0.0
    %237 = vmatpush1.msra.mxu0 0.0
    %238 = vmatprep.subr.mxu0 0.0
    %239 = vmatpush1.msra.mxu0 0.0
    %240 = vmatprep.subr.mxu0 0.0
    %241 = vmatpush1.msra.mxu0 0.0
    %242 = vmatprep.subr.mxu0 0.0
    %243 = vmatpush1.msra.mxu0 0.0
    %244 = vmatprep.mubr.f32.mxu0 0.0
    %245 = vmatmul.mubr.f32.gmra.mrb[0].mxu0 %v175
    %v246 = vpop.f32.mrb[0].mxu0
    %v247 = vadd.f32 %v172, %v246
    %v248 = vpop.f32.mrb[0].mxu0
    %249 = vmatprep.mubr.f32.mxu0 0.0
    %250 = vmatmul.mubr.f32.gmra.mrb[0].mxu0 %v178
    %v251 = vpop.f32.mrb[0].mxu0
    %v252 = vadd.f32 %v173, %v251
    %v253 = vpop.f32.mrb[0].mxu0
    %254 = vdwg.mxu0
    %v255 = vadd.f32 %v80, %v247
    %v256 = vadd.f32 %v81, %v252
    %v257 = vadd.f32 %v82, %v247
    %v258 = vadd.f32 %v83, %v252
    %259 = vmatprep.subr.mxu0 0.0
    %260 = vmatpush1.msra.mxu0 %v255
    %261 = vmatprep.subr.mxu0 0.0
    %262 = vmatpush1.msra.mxu0 %v256
    %263 = vmatprep.subr.mxu0 0.0
    %264 = vmatpush1.msra.mxu0 %v257
    %265 = vmatprep.subr.mxu0 0.0
    %266 = vmatpush1.msra.mxu0 %v258
    %267 = vmatprep.subr.mxu0 0.0
    %268 = vmatpush1.msra.mxu0 0.0
    %269 = vmatprep.subr.mxu0 0.0
    %270 = vmatpush1.msra.mxu0 0.0
    %271 = vmatprep.subr.mxu0 0.0
    %272 = vmatpush1.msra.mxu0 0.0
    %273 = vmatprep.subr.mxu0 0.0
    %274 = vmatpush1.msra.mxu0 0.0
    %275 = vmatprep.subr.mxu0 0.0
    %276 = vmatpush1.msra.mxu0 0.0
    %277 = vmatprep.subr.mxu0 0.0
    %278 = vmatpush1.msra.mxu0 0.0
    %279 = vmatprep.subr.mxu0 0.0
    %280 = vmatpush1.msra.mxu0 0.0
    %281 = vmatprep.subr.mxu0 0.0
    %282 = vmatpush1.msra.mxu0 0.0
    %283 = vmatprep.subr.mxu0 0.0
    %284 = vmatpush1.msra.mxu0 0.0
    %285 = vmatprep.subr.mxu0 0.0
    %286 = vmatpush1.msra.mxu0 0.0
    %287 = vmatprep.subr.mxu0 0.0
    %288 = vmatpush1.msra.mxu0 0.0
    %289 = vmatprep.subr.mxu0 0.0
    %290 = vmatpush1.msra.mxu0 0.0
    %291 = vmatprep.subr.mxu0 0.0
    %292 = vmatpush1.msra.mxu0 0.0
    %293 = vmatprep.subr.mxu0 0.0
    %294 = vmatpush1.msra.mxu0 0.0
    %295 = vmatprep.subr.mxu0 0.0
    %296 = vmatpush1.msra.mxu0 0.0
    %297 = vmatprep.subr.mxu0 0.0
    %298 = vmatpush1.msra.mxu0 0.0
    %299 = vmatprep.subr.mxu0 0.0
    %300 = vmatpush1.msra.mxu0 0.0
    %301 = vmatprep.subr.mxu0 0.0
    %302 = vmatpush1.msra.mxu0 0.0
    %303 = vmatprep.subr.mxu0 0.0
    %304 = vmatpush1.msra.mxu0 0.0
    %305 = vmatprep.subr.mxu0 0.0
    %306 = vmatpush1.msra.mxu0 0.0
    %307 = vmatprep.subr.mxu0 0.0
    %308 = vmatpush1.msra.mxu0 0.0
    %309 = vmatprep.subr.mxu0 0.0
    %310 = vmatpush1.msra.mxu0 0.0
    %311 = vmatprep.subr.mxu0 0.0
    %312 = vmatpush1.msra.mxu0 0.0
    %313 = vmatprep.subr.mxu0 0.0
    %314 = vmatpush1.msra.mxu0 0.0
    %315 = vmatprep.subr.mxu0 0.0
    %316 = vmatpush1.msra.mxu0 0.0
    %317 = vmatprep.subr.mxu0 0.0
    %318 = vmatpush1.msra.mxu0 0.0
    %319 = vmatprep.subr.mxu0 0.0
    %320 = vmatpush1.msra.mxu0 0.0
    %321 = vmatprep.subr.mxu0 0.0
    %322 = vmatpush1.msra.mxu0 0.0
    %323 = vmatprep.mubr.f32.mxu0 0.0
    %324 = vmatmul.mubr.f32.gmra.mrb[0].mxu0 %v88
    %v325 = vpop.f32.mrb[0].mxu0
    %v326 = vadd.f32 0.0, %v325
    %v327 = vpop.f32.mrb[0].mxu0
    %328 = vmatprep.mubr.f32.mxu0 0.0
    %329 = vmatmul.mubr.f32.gmra.mrb[0].mxu0 %v91
    %v330 = vpop.f32.mrb[0].mxu0
    %v331 = vadd.f32 0.0, %v330
    %v332 = vpop.f32.mrb[0].mxu0
    %333 = vdwg.mxu0
    %v335 = vsel %vm86, %v326, 0
    %v338 = vsel %vm86, %v331, 0
    %340 = vmatprep.subr.mxu0 0.0
    %341 = vmatpush1.msra.mxu0 %v168
    %342 = vmatprep.subr.mxu0 0.0
    %343 = vmatpush1.msra.mxu0 %v169
    %344 = vmatprep.subr.mxu0 0.0
    %345 = vmatpush1.msra.mxu0 %v170
    %346 = vmatprep.subr.mxu0 0.0
    %347 = vmatpush1.msra.mxu0 %v171
    %348 = vmatprep.subr.mxu0 0.0
    %349 = vmatpush1.msra.mxu0 0.0
    %350 = vmatprep.subr.mxu0 0.0
    %351 = vmatpush1.msra.mxu0 0.0
    %352 = vmatprep.subr.mxu0 0.0
    %353 = vmatpush1.msra.mxu0 0.0
    %354 = vmatprep.subr.mxu0 0.0
    %355 = vmatpush1.msra.mxu0 0.0
    %356 = vmatprep.subr.mxu0 0.0
    %357 = vmatpush1.msra.mxu0 0.0
    %358 = vmatprep.subr.mxu0 0.0
    %359 = vmatpush1.msra.mxu0 0.0
    %360 = vmatprep.subr.mxu0 0.0
    %361 = vmatpush1.msra.mxu0 0.0
    %362 = vmatprep.subr.mxu0 0.0
    %363 = vmatpush1.msra.mxu0 0.0
    %364 = vmatprep.subr.mxu0 0.0
    %365 = vmatpush1.msra.mxu0 0.0
    %366 = vmatprep.subr.mxu0 0.0
    %367 = vmatpush1.msra.mxu0 0.0
    %368 = vmatprep.subr.mxu0 0.0
    %369 = vmatpush1.msra.mxu0 0.0
    %370 = vmatprep.subr.mxu0 0.0
    %371 = vmatpush1.msra.mxu0 0.0
    %372 = vmatprep.subr.mxu0 0.0
    %373 = vmatpush1.msra.mxu0 0.0
    %374 = vmatprep.subr.mxu0 0.0
    %375 = vmatpush1.msra.mxu0 0.0
    %376 = vmatprep.subr.mxu0 0.0
    %377 = vmatpush1.msra.mxu0 0.0
    %378 = vmatprep.subr.mxu0 0.0
    %379 = vmatpush1.msra.mxu0 0.0
    %380 = vmatprep.subr.mxu0 0.0
    %381 = vmatpush1.msra.mxu0 0.0
    %382 = vmatprep.subr.mxu0 0.0
    %383 = vmatpush1.msra.mxu0 0.0
    %384 = vmatprep.subr.mxu0 0.0
    %385 = vmatpush1.msra.mxu0 0.0
    %386 = vmatprep.subr.mxu0 0.0
    %387 = vmatpush1.msra.mxu0 0.0
    %388 = vmatprep.subr.mxu0 0.0
    %389 = vmatpush1.msra.mxu0 0.0
    %390 = vmatprep.subr.mxu0 0.0
    %391 = vmatpush1.msra.mxu0 0.0
    %392 = vmatprep.subr.mxu0 0.0
    %393 = vmatpush1.msra.mxu0 0.0
    %394 = vmatprep.subr.mxu0 0.0
    %395 = vmatpush1.msra.mxu0 0.0
    %396 = vmatprep.subr.mxu0 0.0
    %397 = vmatpush1.msra.mxu0 0.0
    %398 = vmatprep.subr.mxu0 0.0
    %399 = vmatpush1.msra.mxu0 0.0
    %400 = vmatprep.subr.mxu0 0.0
    %401 = vmatpush1.msra.mxu0 0.0
    %402 = vmatprep.subr.mxu0 0.0
    %403 = vmatpush1.msra.mxu0 0.0
    %404 = vmatprep.mubr.f32.mxu0 0.0
    %405 = vmatmul.mubr.f32.gmra.mrb[0].mxu0 %v335
    %v406 = vpop.f32.mrb[0].mxu0
    %v407 = vadd.f32 %v172, %v406
    %v408 = vpop.f32.mrb[0].mxu0
    %409 = vmatprep.mubr.f32.mxu0 0.0
    %410 = vmatmul.mubr.f32.gmra.mrb[0].mxu0 %v338
    %v411 = vpop.f32.mrb[0].mxu0
    %v412 = vadd.f32 %v173, %v411
    %v413 = vpop.f32.mrb[0].mxu0
    %414 = vdwg.mxu0
    %v415 = vadd.f32 %v255, %v407
    %v416 = vadd.f32 %v256, %v412
    %v417 = vadd.f32 %v257, %v407
    %v418 = vadd.f32 %v258, %v412
    %s419 = scalar_lea.vmem [#allocation9], 32
    %v420 = vld [vmem:[%s419] sm:$0xff]
    %v421 = vld [vmem:[%s419 + $0x8] sm:$0xff]
    %v422 = vld [vmem:[%s419 + $0x10] sm:$0xff]
    %v423 = vld [vmem:[%s419 + $0x18] sm:$0xff]
    %v424 = vld [vmem:[%s4] sm:$0x1]
    %v425 = vlaneseq
    %v426 = vshrl.u32 %v425, 7
    %v427 = vsub.s32 0, %v426
    %v428 = vrot.slane %v424, %v427
    %v430 = vsel %vm86, %v415, 0
    %v433 = vsel %vm86, %v416, 0
    %v436 = vsel %vm86, %v417, 0
    %v439 = vsel %vm86, %v418, 0
    %441 = vmatprep.subr.mxu0 0.0
    %442 = vmatpush1.msra.mxu0 %v420
    %443 = vmatprep.subr.mxu0 0.0
    %444 = vmatpush1.msra.mxu0 %v421
    %445 = vmatprep.subr.mxu0 0.0
    %446 = vmatpush1.msra.mxu0 %v422
    %447 = vmatprep.subr.mxu0 0.0
    %448 = vmatpush1.msra.mxu0 %v423
    %449 = vmatprep.subr.mxu0 0.0
    %450 = vmatpush1.msra.mxu0 0.0
    %451 = vmatprep.subr.mxu0 0.0
    %452 = vmatpush1.msra.mxu0 0.0
    %453 = vmatprep.subr.mxu0 0.0
    %454 = vmatpush1.msra.mxu0 0.0
    %455 = vmatprep.subr.mxu0 0.0
    %456 = vmatpush1.msra.mxu0 0.0
    %457 = vmatprep.subr.mxu0 0.0
    %458 = vmatpush1.msra.mxu0 0.0
    %459 = vmatprep.subr.mxu0 0.0
    %460 = vmatpush1.msra.mxu0 0.0
    %461 = vmatprep.subr.mxu0 0.0
    %462 = vmatpush1.msra.mxu0 0.0
    %463 = vmatprep.subr.mxu0 0.0
    %464 = vmatpush1.msra.mxu0 0.0
    %465 = vmatprep.subr.mxu0 0.0
    %466 = vmatpush1.msra.mxu0 0.0
    %467 = vmatprep.subr.mxu0 0.0
    %468 = vmatpush1.msra.mxu0 0.0
    %469 = vmatprep.subr.mxu0 0.0
    %470 = vmatpush1.msra.mxu0 0.0
    %471 = vmatprep.subr.mxu0 0.0
    %472 = vmatpush1.msra.mxu0 0.0
    %473 = vmatprep.subr.mxu0 0.0
    %474 = vmatpush1.msra.mxu0 0.0
    %475 = vmatprep.subr.mxu0 0.0
    %476 = vmatpush1.msra.mxu0 0.0
    %477 = vmatprep.subr.mxu0 0.0
    %478 = vmatpush1.msra.mxu0 0.0
    %479 = vmatprep.subr.mxu0 0.0
    %480 = vmatpush1.msra.mxu0 0.0
    %481 = vmatprep.subr.mxu0 0.0
    %482 = vmatpush1.msra.mxu0 0.0
    %483 = vmatprep.subr.mxu0 0.0
    %484 = vmatpush1.msra.mxu0 0.0
    %485 = vmatprep.subr.mxu0 0.0
    %486 = vmatpush1.msra.mxu0 0.0
    %487 = vmatprep.subr.mxu0 0.0
    %488 = vmatpush1.msra.mxu0 0.0
    %489 = vmatprep.subr.mxu0 0.0
    %490 = vmatpush1.msra.mxu0 0.0
    %491 = vmatprep.subr.mxu0 0.0
    %492 = vmatpush1.msra.mxu0 0.0
    %493 = vmatprep.subr.mxu0 0.0
    %494 = vmatpush1.msra.mxu0 0.0
    %495 = vmatprep.subr.mxu0 0.0
    %496 = vmatpush1.msra.mxu0 0.0
    %497 = vmatprep.subr.mxu0 0.0
    %498 = vmatpush1.msra.mxu0 0.0
    %499 = vmatprep.subr.mxu0 0.0
    %500 = vmatpush1.msra.mxu0 0.0
    %501 = vmatprep.subr.mxu0 0.0
    %502 = vmatpush1.msra.mxu0 0.0
    %503 = vmatprep.subr.mxu0 0.0
    %504 = vmatpush1.msra.mxu0 0.0
    %505 = vmatprep.mubr.f32.mxu0 0.0
    %506 = vmatmul.mubr.f32.gmra.mrb[0].mxu0 %v430
    %v507 = vpop.f32.mrb[0].mxu0
    %v508 = vadd.f32 %v428, %v507
    %v509 = vpop.f32.mrb[0].mxu0
    %510 = vmatprep.mubr.f32.mxu0 0.0
    %511 = vmatmul.mubr.f32.gmra.mrb[0].mxu0 %v433
    %v512 = vpop.f32.mrb[0].mxu0
    %v513 = vadd.f32 %v428, %v512
    %v514 = vpop.f32.mrb[0].mxu0
    %515 = vmatprep.mubr.f32.mxu0 0.0
    %516 = vmatmul.mubr.f32.gmra.mrb[0].mxu0 %v436
    %v517 = vpop.f32.mrb[0].mxu0
    %v518 = vadd.f32 %v428, %v517
    %v519 = vpop.f32.mrb[0].mxu0
    %520 = vmatprep.mubr.f32.mxu0 0.0
    %521 = vmatmul.mubr.f32.gmra.mrb[0].mxu0 %v439
    %v522 = vpop.f32.mrb[0].mxu0
    %v523 = vadd.f32 %v428, %v522
    %v524 = vpop.f32.mrb[0].mxu0
    %525 = vdwg.mxu0
    %v526 = vmax.f32 %v508, 0.0
    %v527 = vmax.f32 %v513, 0.0
    %v528 = vmax.f32 %v518, 0.0
    %v529 = vmax.f32 %v523, 0.0
    %v530 = vld [vmem:[%s4 + $0x1] sm:$0x1]
    %v531 = vlaneseq
    %v532 = vshrl.u32 %v531, 7
    %v533 = vsub.s32 0, %v532
    %v534 = vrot.slane %v530, %v533
    %v535 = vmul.f32 %v526, %v534
    %v536 = vmul.f32 %v527, %v534
    %v537 = vmul.f32 %v528, %v534
    %v538 = vmul.f32 %v529, %v534
    %v539 = vsel %vm86, %v535, 0.0
    %540 = vadd.xlane.f32.xlu0 %v539
    %v541 = vpop.xlane.xlu0 %540
    %v542 = vsel %vm86, %v536, 0.0
    %543 = vadd.xlane.f32.xlu0 %v542
    %v544 = vpop.xlane.xlu0 %543
    %v545 = vsel %vm86, %v537, 0.0
    %546 = vadd.xlane.f32.xlu0 %v545
    %v547 = vpop.xlane.xlu0 %546
    %v548 = vsel %vm86, %v538, 0.0
    %549 = vadd.xlane.f32.xlu0 %v548
    %v550 = vpop.xlane.xlu0 %549
    %s551 = sld [smem:[#allocation2]]
    %v552 = vstv %s551
    %v553 = vadd.f32 %v541, %v552
    %v554 = vadd.f32 %v544, %v552
    %v555 = vadd.f32 %v547, %v552
    %v556 = vadd.f32 %v550, %v552
    %v557 = vxor.u32 %v553, 2147483648
    %v558 = vxor.u32 %v554, 2147483648
    %v559 = vxor.u32 %v555, 2147483648
    %v560 = vxor.u32 %v556, 2147483648
    %v561 = vmul.f32 %v557, 1.442695
    %v562 = vpow.pop %v561
    %v563 = vmul.f32 %v558, 1.442695
    %v564 = vpow.pop %v563
    %v565 = vmul.f32 %v559, 1.442695
    %v566 = vpow.pop %v565
    %v567 = vmul.f32 %v560, 1.442695
    %v568 = vpow.pop %v567
    %v569 = vadd.f32 %v562, 1.0
    %v570 = vadd.f32 %v564, 1.0
    %v571 = vadd.f32 %v566, 1.0
    %v572 = vadd.f32 %v568, 1.0
    %v573 = vrcp.pop %v569
    %v574 = vmul.f32 1.0, %v573
    %v575 = vrcp.pop %v570
    %v576 = vmul.f32 1.0, %v575
    %v577 = vrcp.pop %v571
    %v578 = vmul.f32 1.0, %v577
    %v579 = vrcp.pop %v572
    %v580 = vmul.f32 1.0, %v579
    %v585 = vlaneseq
    %v586 = vand.u32 %v585, 127
    %v587 = vlaneseq
    %v588 = vshrl.u32 %v587, 7
    %v589 = vsub.s32 %v586, %v588
    %v590 = vrot.slane %v574, %v589
    %v591 = vadd.s32 %v586, 4294967288
    %v592 = vlaneseq
    %v593 = vshrl.u32 %v592, 7
    %v594 = vsub.s32 %v591, %v593
    %v595 = vrot.slane %v576, %v594
    %vm596 = vcmask 130112
    %v597 = vsel %vm596, %v595, %v590
    %v598 = vlaneseq
    %v599 = vshrl.u32 %v598, 7
    %v600 = vsub.s32 %v586, %v599
    %v601 = vrot.slane %v578, %v600
    %v602 = vlaneseq
    %v603 = vshrl.u32 %v602, 7
    %v604 = vsub.s32 %v591, %v603
    %v605 = vrot.slane %v580, %v604
    %v606 = vsel %vm596, %v605, %v601
    %vm607 = vcmask 1041409
    %v608 = vsel %vm607, %v606, %v597
    %vm610 = vcmask 123904
    %611 = vst.msk [vmem:[#allocation11] sm:$0x3] %vm610, %v608
    // Predicated region
    $region42: #{tpu_custom_call.1} parent=1 // pred_check
      _
    $region43: #{tpu_custom_call.1} parent=1 // pred_check_branch
      %613 = sbr.rel (0) target = $region45
    $region44: #{tpu_custom_call.1} parent=1 // pred_region
      %s615 = ssub.s32 32, 32
      %616 = vsyncadd [#allocation5], %s615
      %s618 = sshll.u32 [#allocation11], 4
      %s619 = int_to_ptr.vmem [resolvable:$true] %s618
      %621 = dma.vmem_to_hbm [thread:$0]  %s619, 32, %s6, [#allocation5]
    $region45: #{tpu_custom_call.1} parent=1 // pred_fallthru
      _
    // Predicated region
    $region46: #{tpu_custom_call.1} parent=1 // pred_check
      _
    $region47: #{tpu_custom_call.1} parent=1 // pred_check_branch
      %623 = sbr.rel (0) target = $region49
    $region48: #{tpu_custom_call.1} parent=1 // pred_region
      %624 = dma.done [#allocation5], 32
    $region49: #{tpu_custom_call.1} parent=1 // pred_fallthru
      _
    %625 = vsyncpa [#allocation4], 1
    %626 = vsyncpa [#allocation7], 1
    %627 = vsyncpa [#allocation10], 1
    %628 = vsyncpa [#allocation5], 1

</llo_original>
